<compile_context>
chip_gen: v7x
topology: tpu7x:2x2x1
jax: 0.10.0
libtpu: 0.0.40
codegen_flags: <defaults>
</compile_context>

<pallas_src>
import math
import functools

import jax
import jax.numpy as jnp
from jax import lax
from jax.experimental import pallas as pl
from jax.experimental.pallas import tpu as pltpu


# ----------------------------------------------------------------------------
# Kernel 1: tiled dense linear  y = x @ W + b   (q/k/v/out projections)
# ----------------------------------------------------------------------------
def _linear_kernel(x_ref, w_ref, b_ref, o_ref):
    # x: (TM, Din), w: (Din, TN), b: (1, TN).  Operands go to the MXU in their
    # native dtype (bf16 stays bf16); accumulation is f32 via
    # preferred_element_type.
    y = jnp.dot(x_ref[...], w_ref[...], preferred_element_type=jnp.float32)
    y = y + b_ref[...].astype(jnp.float32)
    o_ref[...] = y.astype(o_ref.dtype)


def _pick_tile(dim, pref, quantum):
    """Largest legal tile <= pref: either the full dim or a multiple of quantum."""
    if dim <= pref:
        return dim
    return max((pref // quantum) * quantum, quantum)


def pallas_linear(x, w, b, *, tm=512, tn=512):
    """x: (N, Din), w: (Din, Dout), b: (1, Dout) -> (N, Dout)."""
    N, Din = x.shape
    Dout = w.shape[1]
    itemsize = x.dtype.itemsize

    TM = _pick_tile(N, tm, 8)
    TN = _pick_tile(Dout, tn, 128)

    # Keep the double-buffered per-step working set well under the default
    # scoped-VMEM budget (32 MiB) so the same tiling also fits v7x (64 MiB
    # physical VMEM) without generation-specific OOMs.
    def _fits(m, n):
        return 2 * (m * Din + Din * n + n + m * n) * itemsize <= 24 * 1024 * 1024

    while TM > 8 and not _fits(TM, TN):
        TM = max(8, ((TM // 2) + 7) // 8 * 8)
    while TN > 128 and not _fits(TM, TN):
        TN = max(128, ((TN // 2) + 127) // 128 * 128)
    # TODO(synk): add a K-reduction grid axis + f32 VMEM accumulator if Din
    # ever gets large enough that full-Din blocks cannot fit scoped VMEM.

    grid = (pl.cdiv(N, TM), pl.cdiv(Dout, TN))
    cost = pl.CostEstimate(
        flops=2 * N * Din * Dout,
        transcendentals=0,
        bytes_accessed=(N * Din + Din * Dout + Dout + N * Dout) * itemsize,
    )
    return pl.pallas_call(
        _linear_kernel,
        out_shape=jax.ShapeDtypeStruct((N, Dout), x.dtype),
        grid=grid,
        in_specs=[
            pl.BlockSpec((TM, Din), lambda i, j: (i, 0)),
            pl.BlockSpec((Din, TN), lambda i, j: (0, j)),
            pl.BlockSpec((1, TN), lambda i, j: (0, j)),
        ],
        out_specs=pl.BlockSpec((TM, TN), lambda i, j: (i, j)),
        compiler_params=pltpu.CompilerParams(
            dimension_semantics=("parallel", "parallel")),
        cost_estimate=cost,
    )(x, w, b)


# ----------------------------------------------------------------------------
# Kernel 2: scaled-dot-product attention, one batch element (all heads) per
# grid step.  Heads are sliced out of the lane dimension in-kernel, so the
# kernel consumes/produces the projection layout directly (no transposes).
# ----------------------------------------------------------------------------
def _attn_kernel(q_ref, k_ref, v_ref, o_ref, a_ref, *, n_heads, scale):
    q = q_ref[0]                                   # (L, D)
    k = k_ref[0]                                   # (S, D)
    v = v_ref[0]                                   # (S, D)
    D = q.shape[-1]
    E = D // n_heads

    ctx = []
    for h in range(n_heads):                       # static unrolled head loop
        lo, hi = h * E, (h + 1) * E
        qh = q[:, lo:hi]                           # (L, E)  lane slice
        kh = k[:, lo:hi]                           # (S, E)
        vh = v[:, lo:hi]                           # (S, E)

        # scores = qh @ kh^T without materializing kh.T (contract last dims)
        s = lax.dot_general(qh, kh, (((1,), (1,)), ((), ())),
                            preferred_element_type=jnp.float32) * scale
        m = jnp.max(s, axis=-1, keepdims=True)
        p = jnp.exp(s - m)
        denom = jnp.sum(p, axis=-1, keepdims=True)
        inv = pl.reciprocal(denom, approx=True)    # EUP slot (nearly free)
        inv = inv * (2.0 - denom * inv)            # one Newton step -> f32 acc.
        attn = p * inv                             # (L, S)

        a_ref[0, h] = attn.astype(a_ref.dtype)
        ctx.append(
            lax.dot_general(attn.astype(vh.dtype), vh, (((1,), (0,)), ((), ())),
                            preferred_element_type=jnp.float32))

    # single lane-dense (L, D) store for the context
    o_ref[0] = jnp.concatenate(ctx, axis=-1).astype(o_ref.dtype)


def pallas_full_attention(qp, kp, vp, n_heads, scale):
    """qp: (B, L, D), kp/vp: (B, S, D) -> ((B, L, D), (B, H, L, S))."""
    B, L, D = qp.shape
    S = kp.shape[1]
    H = n_heads
    E = D // H
    attn_dtype = qp.dtype      # bf16 in -> bf16 attn out (halves O(L*S) writeback)

    kernel = functools.partial(_attn_kernel, n_heads=H, scale=scale)
    cost = pl.CostEstimate(
        flops=4 * B * H * L * S * E,
        transcendentals=B * H * L * S,
        bytes_accessed=(2 * B * L * D + 2 * B * S * D) * qp.dtype.itemsize
        + B * H * L * S * jnp.dtype(attn_dtype).itemsize,
    )
    return pl.pallas_call(
        kernel,
        out_shape=(
            jax.ShapeDtypeStruct((B, L, D), qp.dtype),
            jax.ShapeDtypeStruct((B, H, L, S), attn_dtype),
        ),
        grid=(B,),
        in_specs=[
            pl.BlockSpec((1, L, D), lambda b: (b, 0, 0)),
            pl.BlockSpec((1, S, D), lambda b: (b, 0, 0)),
            pl.BlockSpec((1, S, D), lambda b: (b, 0, 0)),
        ],
        out_specs=(
            pl.BlockSpec((1, L, D), lambda b: (b, 0, 0)),
            pl.BlockSpec((1, H, L, S), lambda b: (b, 0, 0, 0)),
        ),
        compiler_params=pltpu.CompilerParams(dimension_semantics=("parallel",)),
        cost_estimate=cost,
    )(qp, kp, vp)


# ----------------------------------------------------------------------------
# TSMixer forward (glue in plain JAX, compute in Pallas)
# ----------------------------------------------------------------------------
def init_params(key, d_model):
    """PyTorch nn.Linear-style uniform init, deterministic."""
    bound = 1.0 / math.sqrt(d_model)
    keys = jax.random.split(key, 8)

    def lin(kw, kb):
        w = jax.random.uniform(kw, (d_model, d_model), jnp.float32, -bound, bound)
        b = jax.random.uniform(kb, (1, d_model), jnp.float32, -bound, bound)
        return w, b

    return {
        "q_proj": lin(keys[0], keys[1]),
        "k_proj": lin(keys[2], keys[3]),
        "v_proj": lin(keys[4], keys[5]),
        "out":    lin(keys[6], keys[7]),
    }


def tsmixer_forward(params, q, k, v, n_heads):
    B, L, D = q.shape
    _, S, _ = k.shape
    H = n_heads
    E = D // H

    wq, bq = params["q_proj"]
    wk, bk = params["k_proj"]
    wv, bv = params["v_proj"]

    if (q is k) and (k is v):
        # Self-attention fast path: fuse the three projections into a single
        # (D, 3D) matmul so the activation is read from HBM once.
        w_qkv = jnp.concatenate([wq, wk, wv], axis=1)            # (D, 3D)
        b_qkv = jnp.concatenate([bq, bk, bv], axis=1)            # (1, 3D)
        qkv = pallas_linear(q.reshape(B * L, D), w_qkv, b_qkv)   # (B*L, 3D)
        qp = qkv[:, 0 * D:1 * D].reshape(B, L, D)
        kp = qkv[:, 1 * D:2 * D].reshape(B, S, D)
        vp = qkv[:, 2 * D:3 * D].reshape(B, S, D)
    else:
        qp = pallas_linear(q.reshape(B * L, D), wq, bq).reshape(B, L, D)
        kp = pallas_linear(k.reshape(B * S, D), wk, bk).reshape(B, S, D)
        vp = pallas_linear(v.reshape(B * S, D), wv, bv).reshape(B, S, D)

    scale = 1.0 / math.sqrt(E)
    out, attn = pallas_full_attention(qp, kp, vp, H, scale)      # (B,L,D),(B,H,L,S)

    out = pallas_linear(out.reshape(B * L, D), *params["out"]).reshape(B, L, D)
    return out, attn


# ----------------------------------------------------------------------------
# Pure-JAX reference for a sanity check
# ----------------------------------------------------------------------------
def tsmixer_reference(params, q, k, v, n_heads):
    B, L, D = q.shape
    _, S, _ = k.shape
    H, E = n_heads, D // n_heads

    def lin(x, wb):
        w, b = wb
        return x @ w + b[0]

    qp = lin(q, params["q_proj"]).reshape(B, L, H, E)
    kp = lin(k, params["k_proj"]).reshape(B, S, H, E)
    vp = lin(v, params["v_proj"]).reshape(B, S, H, E)
    scale = 1.0 / math.sqrt(E)
    scores = jnp.einsum("blhe,bshe->bhls", qp, kp) * scale
    attn = jax.nn.softmax(scores, axis=-1)
    out = jnp.einsum("bhls,bshe->blhe", attn, vp).reshape(B, L, D)
    return lin(out, params["out"]), attn


if __name__ == "__main__":
    B, L, S, d_model, n_heads = 2, 8, 8, 32, 4

    key = jax.random.PRNGKey(0)
    kq, kk, kv, kparams, kx = jax.random.split(key, 5)
    q = jax.random.normal(kq, (B, L, d_model), jnp.float32)
    k = jax.random.normal(kk, (B, S, d_model), jnp.float32)
    v = jax.random.normal(kv, (B, S, d_model), jnp.float32)
    params = init_params(kparams, d_model)

    # 1) cross-attention path (separate q/k/v projections)
    out, attn = tsmixer_forward(params, q, k, v, n_heads)
    out = jax.block_until_ready(out)
    attn = jax.block_until_ready(attn)
    out_ref, attn_ref = tsmixer_reference(params, q, k, v, n_heads)
    assert out.shape == (B, L, d_model) and attn.shape == (B, n_heads, L, S)
    assert jnp.allclose(out, out_ref, atol=1e-4, rtol=1e-4)
    assert jnp.allclose(attn, attn_ref, atol=1e-4, rtol=1e-4)

    # 2) self-attention path (fused QKV projection)
    x = jax.random.normal(kx, (B, L, d_model), jnp.float32)
    out_s, attn_s = tsmixer_forward(params, x, x, x, n_heads)
    out_s = jax.block_until_ready(out_s)
    attn_s = jax.block_until_ready(attn_s)
    out_sr, attn_sr = tsmixer_reference(params, x, x, x, n_heads)
    assert jnp.allclose(out_s, out_sr, atol=1e-4, rtol=1e-4)
    assert jnp.allclose(attn_s, attn_sr, atol=1e-4, rtol=1e-4)

    print("KERNEL_OK")
</pallas_src>

<mosaic_0001>
module attributes {stable_mosaic.version = 11 : i64} {
  func.func @_linear_kernel(%arg0: i32, %arg1: i32, %arg2: memref<16x32xf32, #tpu.memory_space<vmem>>, %arg3: memref<32x32xf32, #tpu.memory_space<vmem>>, %arg4: memref<1x32xf32, #tpu.memory_space<vmem>>, %arg5: memref<16x32xf32, #tpu.memory_space<vmem>>) attributes {dimension_semantics = [#tpu.dimension_semantics<parallel>, #tpu.dimension_semantics<parallel>], iteration_bounds = array<i64: 1, 1>, scalar_prefetch = 0 : i64, scratch_operands = 0 : i64, tpu.core_type = #tpu.core_type<tc>, window_params = [{transform_indices = @transform_0, window_bounds = array<i64: 16, 32>}, {transform_indices = @transform_1, window_bounds = array<i64: 32, 32>}, {transform_indices = @transform_2, window_bounds = array<i64: 1, 32>}, {transform_indices = @transform_3, window_bounds = array<i64: 16, 32>}]} {
    %c0 = arith.constant 0 : index
    %c0_0 = arith.constant 0 : index
    %0 = vector.load %arg2[%c0, %c0_0] : memref<16x32xf32, #tpu.memory_space<vmem>>, vector<16x32xf32>
    %c0_1 = arith.constant 0 : index
    %c0_2 = arith.constant 0 : index
    %1 = vector.load %arg3[%c0_1, %c0_2] : memref<32x32xf32, #tpu.memory_space<vmem>>, vector<32x32xf32>
    %cst = arith.constant dense<0.000000e+00> : vector<16x32xf32>
    %2 = tpu.matmul %0, %1, %cst {dimension_numbers = #tpu.dot_dimension_numbers<[1], [0], [0], [1], [0, 0, 1, 1], [], []>} : vector<16x32xf32>, vector<32x32xf32>, vector<16x32xf32> -> vector<16x32xf32>
    %c0_3 = arith.constant 0 : index
    %c0_4 = arith.constant 0 : index
    %3 = vector.load %arg4[%c0_3, %c0_4] : memref<1x32xf32, #tpu.memory_space<vmem>>, vector<1x32xf32>
    %4 = vector.broadcast %3 : vector<1x32xf32> to vector<16x32xf32>
    %5 = arith.addf %2, %4 : vector<16x32xf32>
    %c0_5 = arith.constant 0 : index
    %c0_6 = arith.constant 0 : index
    %6 = vector.load %arg5[%c0_5, %c0_6] : memref<16x32xf32, #tpu.memory_space<vmem>>, vector<16x32xf32>
    tpu.vector_store %arg5[%c0_5, %c0_6], %5 {strides = array<i32>} : memref<16x32xf32, #tpu.memory_space<vmem>>, vector<16x32xf32>,
    return
  }
  func.func @transform_0(%arg0: i32, %arg1: i32) -> (i32, i32) {
    %c0_i32 = arith.constant 0 : i32
    %c0_i32_0 = arith.constant 0 : i32
    return %arg0, %c0_i32 : i32, i32
  }
  func.func @transform_1(%arg0: i32, %arg1: i32) -> (i32, i32) {
    %c0_i32 = arith.constant 0 : i32
    %c0_i32_0 = arith.constant 0 : i32
    return %c0_i32, %arg1 : i32, i32
  }
  func.func @transform_2(%arg0: i32, %arg1: i32) -> (i32, i32) {
    %c0_i32 = arith.constant 0 : i32
    %c0_i32_0 = arith.constant 0 : i32
    return %c0_i32, %arg1 : i32, i32
  }
  func.func @transform_3(%arg0: i32, %arg1: i32) -> (i32, i32) {
    %c0_i32 = arith.constant 0 : i32
    return %arg0, %arg1 : i32, i32
  }
}

</mosaic_0001>

<llo_original>
// kernel: tpu_custom_call.1
$region0: #{tpu_custom_call.1}
  #allocation0 [shape = 'u32[]', space=smem, size = 0x4, offset = 0x4, fixed_abs, tag = 'smem constant byte address 0x4 - core index']
  #allocation1 [shape = 'u32[144,128]{1,0:T(1,128)}', space=vmem, size = 0x12000, scoped, tag = 'internal scratch']
  %s0 = inlined_call_operand.hbm [shape: f32[16,32], index: 0, kind: input, shape index: {}]
  %s1 = inlined_call_operand.hbm [shape: f32[32,32], index: 1, kind: input, shape index: {}]
  %s2 = inlined_call_operand.vmem [shape: f32[1,32], index: 2, kind: input, shape index: {}]
  %s3 = inlined_call_operand.hbm [shape: f32[16,32], index: 3, kind: output, shape index: {}]
  %s4 = sld [smem:[#allocation0]]
  $region30: #{tpu_custom_call.1} parent=0
    _
  %s6 = ssub.s32 1, %s4
  %s7 = scalar_select 0, %s6, %s4
  $region1: #{tpu_custom_call.1} parent=0
    #allocation2 [shape = 'u8[8192]{0}', space=vmem, size = 0x2000, scoped, tag = 'input window, operand 0, single buffered']
    #allocation3 [shape = 's32[1]{0}', space=sflag, size = 0x4, scoped, tag = 'scoped memory for tpu_custom_call.1']
    #allocation4 [shape = 's32[1]{0}', space=sflag, size = 0x4, scoped, tag = 'scoped memory for tpu_custom_call.1']
    #allocation5 [shape = 'u8[16384]{0}', space=vmem, size = 0x4000, scoped, tag = 'input window, operand 1, single buffered']
    #allocation6 [shape = 's32[1]{0}', space=sflag, size = 0x4, scoped, tag = 'scoped memory for tpu_custom_call.1']
    #allocation7 [shape = 'u8[8192]{0}', space=vmem, size = 0x2000, scoped, tag = 'output window, operand 0, single buffered']
    %8 = vsyncpa [#allocation3], 0
    %9 = vsyncpa [#allocation6], 0
    %10 = vsyncpa [#allocation4], 0
    // Predicated region
    $region2: #{tpu_custom_call.1} parent=1 // pred_check
      _
    $region3: #{tpu_custom_call.1} parent=1 // pred_check_branch
      %12 = sbr.rel (0) target = $region5
    $region4: #{tpu_custom_call.1} parent=1 // pred_region
      %s14 = ssub.s32 256, 256
      %15 = vsyncadd [#allocation3], %s14
      %s16 = sshll.u32 [#allocation2], 4
      %s17 = int_to_ptr.vmem [resolvable:$true] %s16
      %22 = dma.hbm_to_vmem [thread:$0]  %s0, 256, %s17, [#allocation3], 128, 128, 8
    $region5: #{tpu_custom_call.1} parent=1 // pred_fallthru
      _
    // Predicated region
    $region6: #{tpu_custom_call.1} parent=1 // pred_check
      _
    $region7: #{tpu_custom_call.1} parent=1 // pred_check_branch
      %24 = sbr.rel (0) target = $region9
    $region8: #{tpu_custom_call.1} parent=1 // pred_region
      %s26 = ssub.s32 512, 512
      %27 = vsyncadd [#allocation6], %s26
      %s28 = sshll.u32 [#allocation5], 4
      %s29 = int_to_ptr.vmem [resolvable:$true] %s28
      %34 = dma.hbm_to_vmem [thread:$0]  %s1, 512, %s29, [#allocation6], 128, 128, 8
    $region9: #{tpu_custom_call.1} parent=1 // pred_fallthru
      _
    // Predicated region
    $region10: #{tpu_custom_call.1} parent=1 // pred_check
      _
    $region11: #{tpu_custom_call.1} parent=1 // pred_check_branch
      %36 = sbr.rel (0) target = $region13
    $region12: #{tpu_custom_call.1} parent=1 // pred_region
      _
    $region13: #{tpu_custom_call.1} parent=1 // pred_fallthru
      _
    // Predicated region
    $region14: #{tpu_custom_call.1} parent=1 // pred_check
      _
    $region15: #{tpu_custom_call.1} parent=1 // pred_check_branch
      %38 = sbr.rel (0) target = $region17
    $region16: #{tpu_custom_call.1} parent=1 // pred_region
      %39 = dma.done [#allocation3], 256
    $region17: #{tpu_custom_call.1} parent=1 // pred_fallthru
      _
    // Predicated region
    $region18: #{tpu_custom_call.1} parent=1 // pred_check
      _
    $region19: #{tpu_custom_call.1} parent=1 // pred_check_branch
      %41 = sbr.rel (0) target = $region21
    $region20: #{tpu_custom_call.1} parent=1 // pred_region
      %42 = dma.done [#allocation6], 512
    $region21: #{tpu_custom_call.1} parent=1 // pred_fallthru
      _
    %v43 = vld [vmem:[#allocation2] sm:$0xff]
    %v44 = vld [vmem:[#allocation2 + $0x8] sm:$0xff]
    %v45 = vld [vmem:[#allocation5] sm:$0xff]
    %v46 = vld [vmem:[#allocation5 + $0x8] sm:$0xff]
    %v47 = vld [vmem:[#allocation5 + $0x10] sm:$0xff]
    %v48 = vld [vmem:[#allocation5 + $0x18] sm:$0xff]
    %v49 = vld [vmem:[%s2] sm:$0x1]
    %v51 = vlaneseq
    %v52 = vshrl.u32 %v51, 7
    %v53 = vsub.s32 0, %v52
    %v54 = vrot.slane %v49, %v53
    %vm56 = vcmask 261120
    %v58 = vsel %vm56, %v43, 0
    %v61 = vsel %vm56, %v44, 0
    %63 = vmatprep.subr.mxu0 0.0
    %64 = vmatpush1.msra.mxu0 %v45
    %65 = vmatprep.subr.mxu0 0.0
    %66 = vmatpush1.msra.mxu0 %v46
    %67 = vmatprep.subr.mxu0 0.0
    %68 = vmatpush1.msra.mxu0 %v47
    %69 = vmatprep.subr.mxu0 0.0
    %70 = vmatpush1.msra.mxu0 %v48
    %71 = vmatprep.subr.mxu0 0.0
    %72 = vmatpush1.msra.mxu0 0.0
    %73 = vmatprep.subr.mxu0 0.0
    %74 = vmatpush1.msra.mxu0 0.0
    %75 = vmatprep.subr.mxu0 0.0
    %76 = vmatpush1.msra.mxu0 0.0
    %77 = vmatprep.subr.mxu0 0.0
    %78 = vmatpush1.msra.mxu0 0.0
    %79 = vmatprep.subr.mxu0 0.0
    %80 = vmatpush1.msra.mxu0 0.0
    %81 = vmatprep.subr.mxu0 0.0
    %82 = vmatpush1.msra.mxu0 0.0
    %83 = vmatprep.subr.mxu0 0.0
    %84 = vmatpush1.msra.mxu0 0.0
    %85 = vmatprep.subr.mxu0 0.0
    %86 = vmatpush1.msra.mxu0 0.0
    %87 = vmatprep.subr.mxu0 0.0
    %88 = vmatpush1.msra.mxu0 0.0
    %89 = vmatprep.subr.mxu0 0.0
    %90 = vmatpush1.msra.mxu0 0.0
    %91 = vmatprep.subr.mxu0 0.0
    %92 = vmatpush1.msra.mxu0 0.0
    %93 = vmatprep.subr.mxu0 0.0
    %94 = vmatpush1.msra.mxu0 0.0
    %95 = vmatprep.subr.mxu0 0.0
    %96 = vmatpush1.msra.mxu0 0.0
    %97 = vmatprep.subr.mxu0 0.0
    %98 = vmatpush1.msra.mxu0 0.0
    %99 = vmatprep.subr.mxu0 0.0
    %100 = vmatpush1.msra.mxu0 0.0
    %101 = vmatprep.subr.mxu0 0.0
    %102 = vmatpush1.msra.mxu0 0.0
    %103 = vmatprep.subr.mxu0 0.0
    %104 = vmatpush1.msra.mxu0 0.0
    %105 = vmatprep.subr.mxu0 0.0
    %106 = vmatpush1.msra.mxu0 0.0
    %107 = vmatprep.subr.mxu0 0.0
    %108 = vmatpush1.msra.mxu0 0.0
    %109 = vmatprep.subr.mxu0 0.0
    %110 = vmatpush1.msra.mxu0 0.0
    %111 = vmatprep.subr.mxu0 0.0
    %112 = vmatpush1.msra.mxu0 0.0
    %113 = vmatprep.subr.mxu0 0.0
    %114 = vmatpush1.msra.mxu0 0.0
    %115 = vmatprep.subr.mxu0 0.0
    %116 = vmatpush1.msra.mxu0 0.0
    %117 = vmatprep.subr.mxu0 0.0
    %118 = vmatpush1.msra.mxu0 0.0
    %119 = vmatprep.subr.mxu0 0.0
    %120 = vmatpush1.msra.mxu0 0.0
    %121 = vmatprep.subr.mxu0 0.0
    %122 = vmatpush1.msra.mxu0 0.0
    %123 = vmatprep.subr.mxu0 0.0
    %124 = vmatpush1.msra.mxu0 0.0
    %125 = vmatprep.subr.mxu0 0.0
    %126 = vmatpush1.msra.mxu0 0.0
    %127 = vmatprep.mubr.f32.mxu0 0.0
    %128 = vmatmul.mubr.f32.gmra.mrb[0].mxu0 %v58
    %v129 = vpop.f32.mrb[0].mxu0
    %v130 = vadd.f32 %v54, %v129
    %v131 = vpop.f32.mrb[0].mxu0
    %132 = vmatprep.mubr.f32.mxu0 0.0
    %133 = vmatmul.mubr.f32.gmra.mrb[0].mxu0 %v61
    %v134 = vpop.f32.mrb[0].mxu0
    %v135 = vadd.f32 %v54, %v134
    %v136 = vpop.f32.mrb[0].mxu0
    %137 = vdwg.mxu0
    %138 = vst.msk [vmem:[#allocation7] sm:$0xff] %vm56, %v130
    %139 = vst.msk [vmem:[#allocation7 + $0x8] sm:$0xff] %vm56, %v135
    // Predicated region
    $region22: #{tpu_custom_call.1} parent=1 // pred_check
      _
    $region23: #{tpu_custom_call.1} parent=1 // pred_check_branch
      %141 = sbr.rel (0) target = $region25
    $region24: #{tpu_custom_call.1} parent=1 // pred_region
      %s143 = ssub.s32 256, 256
      %144 = vsyncadd [#allocation4], %s143
      %s145 = sshll.u32 [#allocation7], 4
      %s146 = int_to_ptr.vmem [resolvable:$true] %s145
      %151 = dma.vmem_to_hbm [thread:$0]  %s146, 256, %s3, [#allocation4], 128, 128, 8
    $region25: #{tpu_custom_call.1} parent=1 // pred_fallthru
      _
    // Predicated region
    $region26: #{tpu_custom_call.1} parent=1 // pred_check
      _
    $region27: #{tpu_custom_call.1} parent=1 // pred_check_branch
      %153 = sbr.rel (0) target = $region29
    $region28: #{tpu_custom_call.1} parent=1 // pred_region
      %154 = dma.done [#allocation4], 256
    $region29: #{tpu_custom_call.1} parent=1 // pred_fallthru
      _
    %155 = vsyncpa [#allocation3], 1
    %156 = vsyncpa [#allocation6], 1
    %157 = vsyncpa [#allocation4], 1

</llo_original>
